<compile_context>
chip_gen: v7x
topology: tpu7x:2x2x1
jax: 0.10.0
libtpu: 0.0.40
codegen_flags: <defaults>
</compile_context>

<pallas_src>
import functools

import jax
import jax.numpy as jnp
from jax import lax
from jax.experimental import pallas as pl
from jax.experimental.pallas import tpu as pltpu

_LANE = 128
_SUBLANE_BF16 = 16   # bf16 packs 2 rows/sublane -> native tile is (16, 128)


def _round_up(n, m):
    return ((n + m - 1) // m) * m


def normalized_adjacency_padded(edge_index, num_nodes, padded_nodes):
    """Dense D^-1/2 (A + I) D^-1/2 built directly at (Np, Np), returned in bf16.

    Matches torch_geometric gcn_norm (unit edge weights, self-loops, symmetric
    normalization).  Duplicate edges are counted (scatter-add); the self-loop
    weight is exactly 1; padded rows/cols are identically zero.
    """
    src, dst = edge_index
    a = jnp.zeros((padded_nodes, padded_nodes), jnp.float32).at[dst, src].add(1.0)
    real = (jnp.arange(padded_nodes) < num_nodes).astype(jnp.float32)
    eye = jnp.eye(padded_nodes, dtype=jnp.float32)
    a_tilde = a * (1.0 - eye) + eye * real[:, None]        # self-loop weight 1, real nodes only
    deg = a_tilde.sum(axis=1)
    d_inv_sqrt = jnp.where(deg > 0.0, lax.rsqrt(deg), 0.0)  # padded / isolated rows -> 0
    a_hat = d_inv_sqrt[:, None] * a_tilde * d_inv_sqrt[None, :]
    return a_hat.astype(jnp.bfloat16)    # cast only AFTER normalization; f32 accumulate in-kernel


def mean_pool_matrix_padded(batch, num_graphs, padded_graphs, padded_nodes):
    """(Gp, Np) bf16 matrix P with P[g, i] = 1/|graph g| for real (g, i), else 0."""
    n = batch.shape[0]
    batch_p = jnp.full((padded_nodes,), -1, batch.dtype).at[:n].set(batch)
    onehot = (batch_p[None, :] == jnp.arange(padded_graphs, dtype=batch.dtype)[:, None])
    onehot = onehot.astype(jnp.float32)
    counts = onehot.sum(axis=1, keepdims=True)
    pool = jnp.where(counts > 0.0, onehot / counts, 0.0)
    return pool.astype(jnp.bfloat16)


def sgconv_kernel(a_ref, x_ref, w1_ref, b1_ref, pool_ref, w2_ref, b2_ref, o_ref,
                  *, num_hops):
    # --- SGConv, project-then-propagate: A^K (x W1) + b1 == (A^K x) W1 + b1 ---
    h = jnp.dot(x_ref[...], w1_ref[...], preferred_element_type=jnp.float32)   # (Np, Hp) f32
    for _ in range(num_hops):                       # K small & static -> unrolled bf16 MXU passes
        h = jnp.dot(a_ref[...], h.astype(jnp.bfloat16), preferred_element_type=jnp.float32)
    h = jnp.maximum(h + b1_ref[...], 0.0)           # bias after propagation + ReLU
    # F.dropout in eval mode: identity.
    # TODO(synk): training-mode dropout (mask + 1/(1-p) scale) via pltpu.prng_* if needed.
    # global_mean_pool as a matmul with the (Gp, Np) mean-pooling matrix
    pooled = jnp.dot(pool_ref[...], h.astype(jnp.bfloat16), preferred_element_type=jnp.float32)
    # classification linear (classes zero-padded to a lane-dense 128 columns)
    logits = jnp.dot(pooled.astype(jnp.bfloat16), w2_ref[...],
                     preferred_element_type=jnp.float32) + b2_ref[...]
    # exact sigmoid: the tail is a single ~16x128 tile, nowhere near EUP-bound.
    o_ref[...] = (1.0 / (1.0 + jnp.exp(-logits))).astype(o_ref.dtype)


def simpleconv3_forward(x, edge_index, w1, b1, w2, b2, batch=None, num_graphs=None,
                        num_hops=3):
    """Eval-mode forward of SimpleConv3 (mode='mean') as one fused Pallas TPU kernel.

    x: (N, vocab) node features; edge_index: (2, E) int32 (src, dst);
    weights stored (in, out), i.e. the transpose of torch's nn.Linear (out, in).
    """
    N, V = x.shape
    H = w1.shape[1]          # 128 for this module
    C = w2.shape[1]
    if batch is None:        # module default: batch = zeros -> a single graph
        batch = jnp.zeros((N,), jnp.int32)
        num_graphs = 1

    # Lane dims padded to 128; graph rows padded to the bf16 sublane tile (16).
    Np = _round_up(N, _LANE)
    Vp = _round_up(V, _LANE)
    Hp = _round_up(H, _LANE)
    Cp = _round_up(C, _LANE)
    Gp = _round_up(num_graphs, _SUBLANE_BF16)

    # Large operands built directly at padded size (no extra N^2 pad round trip).
    a_p = normalized_adjacency_padded(edge_index, N, Np)      # (Np, Np) bf16
    p_p = mean_pool_matrix_padded(batch, num_graphs, Gp, Np)  # (Gp, Np) bf16

    # Small operands: single cheap pads.  Weights/biases could be padded once
    # outside the per-call path when parameters are static.
    pad = lambda arr, shape: jnp.pad(arr, [(0, t - s) for s, t in zip(arr.shape, shape)])
    x_p = pad(x, (Np, Vp)).astype(jnp.bfloat16)
    w1_p = pad(w1, (Vp, Hp)).astype(jnp.bfloat16)
    b1_p = pad(b1, (1, Hp))                  # biases stay f32 (added to f32 accumulators)
    w2_p = pad(w2, (Hp, Cp)).astype(jnp.bfloat16)
    b2_p = pad(b2, (1, Cp))

    full = lambda shape: pl.BlockSpec(shape, lambda: (0,) * len(shape),
                                      memory_space=pltpu.VMEM)
    out_p = pl.pallas_call(
        functools.partial(sgconv_kernel, num_hops=num_hops),
        out_shape=jax.ShapeDtypeStruct((Gp, Cp), jnp.float32),
        # Entire (tiny) problem is VMEM-resident.  For batched graphs / large A,
        # introduce a 'parallel' graph axis + tiled-A contraction grid (see header).
        grid=(),
        in_specs=[full(a_p.shape), full(x_p.shape), full(w1_p.shape), full(b1_p.shape),
                  full(p_p.shape), full(w2_p.shape), full(b2_p.shape)],
        out_specs=full((Gp, Cp)),
        compiler_params=pltpu.CompilerParams(
            # Explicit VMEM budget: fits the weight-resident layout on v7x (64 MiB
            # physical); raise toward 64-96 MiB on v5e/v6e before tiling A.
            vmem_limit_bytes=32 * 1024 * 1024,
        ),
    )(a_p, x_p, w1_p, b1_p, p_p, w2_p, b2_p)

    # slice away class-lane padding and padded graph rows
    return out_p[:num_graphs, :C]


if __name__ == "__main__":
    # Small shapes consistent with the module: vocab=32 input features, hidden=128
    # (fixed by SGConv(vocab, 128, 3)), n_classes=3, two graphs of 8 nodes each.
    vocab, n_classes, K = 32, 3, 3
    hidden = 128
    nodes_per_graph, num_graphs = 8, 2
    N = nodes_per_graph * num_graphs

    # Deterministic undirected ring inside each graph (both edge directions present).
    edges = []
    for g in range(num_graphs):
        base = g * nodes_per_graph
        for i in range(nodes_per_graph):
            u, v = base + i, base + (i + 1) % nodes_per_graph
            edges.append((u, v))
            edges.append((v, u))
    edge_index = jnp.asarray(edges, dtype=jnp.int32).T           # (2, E)
    batch = jnp.repeat(jnp.arange(num_graphs, dtype=jnp.int32), nodes_per_graph)

    key = jax.random.PRNGKey(0)
    kx, kw1, kb1, kw2, kb2 = jax.random.split(key, 5)
    x = jax.random.normal(kx, (N, vocab), dtype=jnp.float32)

    # nn.Linear-style uniform(-1/sqrt(fan_in), 1/sqrt(fan_in)) init; weights stored (in, out).
    lim1 = 1.0 / (vocab ** 0.5)
    lim2 = 1.0 / (hidden ** 0.5)
    w1 = jax.random.uniform(kw1, (vocab, hidden), jnp.float32, -lim1, lim1)
    b1 = jax.random.uniform(kb1, (1, hidden), jnp.float32, -lim1, lim1)
    w2 = jax.random.uniform(kw2, (hidden, n_classes), jnp.float32, -lim2, lim2)
    b2 = jax.random.uniform(kb2, (1, n_classes), jnp.float32, -lim2, lim2)

    out = simpleconv3_forward(x, edge_index, w1, b1, w2, b2,
                              batch=batch, num_graphs=num_graphs, num_hops=K)
    jax.block_until_ready(out)

    # Pure-JAX f32 reference of the eval-mode forward (spec semantics).
    src_r, dst_r = edge_index
    a_ref = jnp.zeros((N, N), jnp.float32).at[dst_r, src_r].add(1.0)
    eye = jnp.eye(N, dtype=jnp.float32)
    a_tilde = a_ref * (1.0 - eye) + eye
    d_is = 1.0 / jnp.sqrt(a_tilde.sum(axis=1))
    a_hat_ref = d_is[:, None] * a_tilde * d_is[None, :]
    h_ref = x
    for _ in range(K):
        h_ref = a_hat_ref @ h_ref
    h_ref = jnp.maximum(h_ref @ w1 + b1, 0.0)                    # SGConv linear + ReLU (dropout: identity)
    seg = (batch[:, None] == jnp.arange(num_graphs)[None, :]).astype(jnp.float32)
    pooled_ref = (seg.T @ h_ref) / seg.sum(axis=0)[:, None]      # global_mean_pool
    ref = jax.nn.sigmoid(pooled_ref @ w2 + b2)

    assert out.shape == (num_graphs, n_classes)
    # Tolerance covers the bf16 MXU operands (f32 accumulation); sigmoid tail is exact.
    assert jnp.allclose(out, ref, atol=1e-2, rtol=1e-2), (out, ref)

    print("KERNEL_OK")
</pallas_src>

<mosaic_0001>
module attributes {stable_mosaic.version = 11 : i64} {
  func.func @sgconv_kernel(%arg0: memref<128x128xbf16, #tpu.memory_space<vmem>>, %arg1: memref<128x128xbf16, #tpu.memory_space<vmem>>, %arg2: memref<128x128xbf16, #tpu.memory_space<vmem>>, %arg3: memref<1x128xf32, #tpu.memory_space<vmem>>, %arg4: memref<16x128xbf16, #tpu.memory_space<vmem>>, %arg5: memref<128x128xbf16, #tpu.memory_space<vmem>>, %arg6: memref<1x128xf32, #tpu.memory_space<vmem>>, %arg7: memref<16x128xf32, #tpu.memory_space<vmem>>) attributes {dimension_semantics = [], scalar_prefetch = 0 : i64, scratch_operands = 0 : i64, tpu.core_type = #tpu.core_type<tc>} {
    %c0 = arith.constant 0 : index
    %c0_0 = arith.constant 0 : index
    %0 = vector.load %arg1[%c0, %c0_0] : memref<128x128xbf16, #tpu.memory_space<vmem>>, vector<128x128xbf16>
    %c0_1 = arith.constant 0 : index
    %c0_2 = arith.constant 0 : index
    %1 = vector.load %arg2[%c0_1, %c0_2] : memref<128x128xbf16, #tpu.memory_space<vmem>>, vector<128x128xbf16>
    %cst = arith.constant dense<0.000000e+00> : vector<128x128xf32>
    %2 = tpu.matmul %0, %1, %cst {dimension_numbers = #tpu.dot_dimension_numbers<[1], [0], [0], [1], [0, 0, 1, 1], [], []>} : vector<128x128xbf16>, vector<128x128xbf16>, vector<128x128xf32> -> vector<128x128xf32>
    %c0_3 = arith.constant 0 : index
    %c0_4 = arith.constant 0 : index
    %3 = vector.load %arg0[%c0_3, %c0_4] : memref<128x128xbf16, #tpu.memory_space<vmem>>, vector<128x128xbf16>
    %4 = arith.truncf %2 : vector<128x128xf32> to vector<128x128xbf16>
    %cst_5 = arith.constant dense<0.000000e+00> : vector<128x128xf32>
    %5 = tpu.matmul %3, %4, %cst_5 {dimension_numbers = #tpu.dot_dimension_numbers<[1], [0], [0], [1], [0, 0, 1, 1], [], []>} : vector<128x128xbf16>, vector<128x128xbf16>, vector<128x128xf32> -> vector<128x128xf32>
    %c0_6 = arith.constant 0 : index
    %c0_7 = arith.constant 0 : index
    %6 = vector.load %arg0[%c0_6, %c0_7] : memref<128x128xbf16, #tpu.memory_space<vmem>>, vector<128x128xbf16>
    %7 = arith.truncf %5 : vector<128x128xf32> to vector<128x128xbf16>
    %cst_8 = arith.constant dense<0.000000e+00> : vector<128x128xf32>
    %8 = tpu.matmul %6, %7, %cst_8 {dimension_numbers = #tpu.dot_dimension_numbers<[1], [0], [0], [1], [0, 0, 1, 1], [], []>} : vector<128x128xbf16>, vector<128x128xbf16>, vector<128x128xf32> -> vector<128x128xf32>
    %c0_9 = arith.constant 0 : index
    %c0_10 = arith.constant 0 : index
    %9 = vector.load %arg0[%c0_9, %c0_10] : memref<128x128xbf16, #tpu.memory_space<vmem>>, vector<128x128xbf16>
    %10 = arith.truncf %8 : vector<128x128xf32> to vector<128x128xbf16>
    %cst_11 = arith.constant dense<0.000000e+00> : vector<128x128xf32>
    %11 = tpu.matmul %9, %10, %cst_11 {dimension_numbers = #tpu.dot_dimension_numbers<[1], [0], [0], [1], [0, 0, 1, 1], [], []>} : vector<128x128xbf16>, vector<128x128xbf16>, vector<128x128xf32> -> vector<128x128xf32>
    %c0_12 = arith.constant 0 : index
    %c0_13 = arith.constant 0 : index
    %12 = vector.load %arg3[%c0_12, %c0_13] : memref<1x128xf32, #tpu.memory_space<vmem>>, vector<1x128xf32>
    %13 = vector.broadcast %12 : vector<1x128xf32> to vector<128x128xf32>
    %14 = arith.addf %11, %13 : vector<128x128xf32>
    %cst_14 = arith.constant 0.000000e+00 : f32
    %15 = vector.broadcast %cst_14 : f32 to vector<128x128xf32>
    %16 = arith.maximumf %14, %15 : vector<128x128xf32>
    %c0_15 = arith.constant 0 : index
    %c0_16 = arith.constant 0 : index
    %17 = vector.load %arg4[%c0_15, %c0_16] : memref<16x128xbf16, #tpu.memory_space<vmem>>, vector<16x128xbf16>
    %18 = arith.truncf %16 : vector<128x128xf32> to vector<128x128xbf16>
    %cst_17 = arith.constant dense<0.000000e+00> : vector<16x128xf32>
    %19 = tpu.matmul %17, %18, %cst_17 {dimension_numbers = #tpu.dot_dimension_numbers<[1], [0], [0], [1], [0, 0, 1, 1], [], []>} : vector<16x128xbf16>, vector<128x128xbf16>, vector<16x128xf32> -> vector<16x128xf32>
    %20 = arith.truncf %19 : vector<16x128xf32> to vector<16x128xbf16>
    %c0_18 = arith.constant 0 : index
    %c0_19 = arith.constant 0 : index
    %21 = vector.load %arg5[%c0_18, %c0_19] : memref<128x128xbf16, #tpu.memory_space<vmem>>, vector<128x128xbf16>
    %cst_20 = arith.constant dense<0.000000e+00> : vector<16x128xf32>
    %22 = tpu.matmul %20, %21, %cst_20 {dimension_numbers = #tpu.dot_dimension_numbers<[1], [0], [0], [1], [0, 0, 1, 1], [], []>} : vector<16x128xbf16>, vector<128x128xbf16>, vector<16x128xf32> -> vector<16x128xf32>
    %c0_21 = arith.constant 0 : index
    %c0_22 = arith.constant 0 : index
    %23 = vector.load %arg6[%c0_21, %c0_22] : memref<1x128xf32, #tpu.memory_space<vmem>>, vector<1x128xf32>
    %24 = vector.broadcast %23 : vector<1x128xf32> to vector<16x128xf32>
    %25 = arith.addf %22, %24 : vector<16x128xf32>
    %cst_23 = arith.constant 0.000000e+00 : f32
    %26 = vector.broadcast %cst_23 : f32 to vector<16x128xf32>
    %27 = arith.subf %26, %25 : vector<16x128xf32>
    %28 = math.exp %27 : vector<16x128xf32>
    %cst_24 = arith.constant 1.000000e+00 : f32
    %29 = vector.broadcast %cst_24 : f32 to vector<16x128xf32>
    %30 = arith.addf %29, %28 : vector<16x128xf32>
    %cst_25 = arith.constant 1.000000e+00 : f32
    %31 = vector.broadcast %cst_25 : f32 to vector<16x128xf32>
    %32 = arith.divf %31, %30 : vector<16x128xf32>
    %c0_26 = arith.constant 0 : index
    %c0_27 = arith.constant 0 : index
    %33 = vector.load %arg7[%c0_26, %c0_27] : memref<16x128xf32, #tpu.memory_space<vmem>>, vector<16x128xf32>
    tpu.vector_store %arg7[%c0_26, %c0_27], %32 {strides = array<i32>} : memref<16x128xf32, #tpu.memory_space<vmem>>, vector<16x128xf32>,
    return
  }
}

</mosaic_0001>

<llo_original>
// kernel: tpu_custom_call.1
$region0: #{tpu_custom_call.1}
  #allocation0 [shape = 'u32[]', space=smem, size = 0x4, offset = 0x4, fixed_abs, tag = 'smem constant byte address 0x4 - core index']
  #allocation1 [shape = 'u32[144,128]{1,0:T(1,128)}', space=vmem, size = 0x12000, scoped, tag = 'internal scratch']
  %s0 = inlined_call_operand.hbm [shape: bf16[128,128], index: 0, kind: input, shape index: {}]
  %s1 = inlined_call_operand.hbm [shape: bf16[128,128], index: 1, kind: input, shape index: {}]
  %s2 = inlined_call_operand.hbm [shape: bf16[128,128], index: 2, kind: input, shape index: {}]
  %s3 = inlined_call_operand.vmem [shape: f32[1,128], index: 3, kind: input, shape index: {}]
  %s4 = inlined_call_operand.vmem [shape: bf16[16,128], index: 4, kind: input, shape index: {}]
  %s5 = inlined_call_operand.hbm [shape: bf16[128,128], index: 5, kind: input, shape index: {}]
  %s6 = inlined_call_operand.vmem [shape: f32[1,128], index: 6, kind: input, shape index: {}]
  %s7 = inlined_call_operand.hbm [shape: f32[16,128], index: 7, kind: output, shape index: {}]
  %s8 = sld [smem:[#allocation0]]
  $region54: #{tpu_custom_call.1} parent=0
    _
  %s10 = ssub.s32 1, %s8
  %s11 = scalar_select 0, %s10, %s8
  $region1: #{tpu_custom_call.1} parent=0
    #allocation2 [shape = 'u8[32768]{0}', space=vmem, size = 0x8000, scoped, tag = 'input window, operand 0, single buffered']
    #allocation3 [shape = 's32[1]{0}', space=sflag, size = 0x4, scoped, tag = 'scoped memory for tpu_custom_call.1']
    #allocation4 [shape = 's32[1]{0}', space=sflag, size = 0x4, scoped, tag = 'scoped memory for tpu_custom_call.1']
    #allocation5 [shape = 'u8[32768]{0}', space=vmem, size = 0x8000, scoped, tag = 'input window, operand 1, single buffered']
    #allocation6 [shape = 's32[1]{0}', space=sflag, size = 0x4, scoped, tag = 'scoped memory for tpu_custom_call.1']
    #allocation7 [shape = 'u8[32768]{0}', space=vmem, size = 0x8000, scoped, tag = 'input window, operand 2, single buffered']
    #allocation8 [shape = 'u8[32768]{0}', space=vmem, size = 0x8000, scoped, tag = 'input window, operand 5, single buffered']
    #allocation9 [shape = 's32[1]{0}', space=sflag, size = 0x4, scoped, tag = 'scoped memory for tpu_custom_call.1']
    #allocation10 [shape = 'u8[8192]{0}', space=vmem, size = 0x2000, scoped, tag = 'output window, operand 0, single buffered']
    %12 = vsyncpa [#allocation3], 0
    %13 = vsyncpa [#allocation6], 0
    %14 = vsyncpa [#allocation9], 0
    %15 = vsyncpa [#allocation4], 0
    // Predicated region
    $region2: #{tpu_custom_call.1} parent=1 // pred_check
      _
    $region3: #{tpu_custom_call.1} parent=1 // pred_check_branch
      %17 = sbr.rel (0) target = $region5
    $region4: #{tpu_custom_call.1} parent=1 // pred_region
      %s19 = ssub.s32 1024, 1024
      %20 = vsyncadd [#allocation3], %s19
      %s21 = sshll.u32 [#allocation2], 4
      %s22 = int_to_ptr.vmem [resolvable:$true] %s21
      %27 = dma.hbm_to_vmem [thread:$0]  %s0, 1024, %s22, [#allocation3], 64, 64, 4
    $region5: #{tpu_custom_call.1} parent=1 // pred_fallthru
      _
    // Predicated region
    $region6: #{tpu_custom_call.1} parent=1 // pred_check
      _
    $region7: #{tpu_custom_call.1} parent=1 // pred_check_branch
      %29 = sbr.rel (0) target = $region9
    $region8: #{tpu_custom_call.1} parent=1 // pred_region
      %s31 = ssub.s32 1024, 1024
      %32 = vsyncadd [#allocation6], %s31
      %s33 = sshll.u32 [#allocation5], 4
      %s34 = int_to_ptr.vmem [resolvable:$true] %s33
      %39 = dma.hbm_to_vmem [thread:$0]  %s1, 1024, %s34, [#allocation6], 64, 64, 4
    $region9: #{tpu_custom_call.1} parent=1 // pred_fallthru
      _
    // Predicated region
    $region10: #{tpu_custom_call.1} parent=1 // pred_check
      _
    $region11: #{tpu_custom_call.1} parent=1 // pred_check_branch
      %41 = sbr.rel (0) target = $region13
    $region12: #{tpu_custom_call.1} parent=1 // pred_region
      %s43 = ssub.s32 1024, 1024
      %44 = vsyncadd [#allocation6], %s43
      %s45 = sshll.u32 [#allocation7], 4
      %s46 = int_to_ptr.vmem [resolvable:$true] %s45
      %51 = dma.hbm_to_vmem [thread:$0]  %s2, 1024, %s46, [#allocation6], 64, 64, 4
    $region13: #{tpu_custom_call.1} parent=1 // pred_fallthru
      _
    // Predicated region
    $region14: #{tpu_custom_call.1} parent=1 // pred_check
      _
    $region15: #{tpu_custom_call.1} parent=1 // pred_check_branch
      %53 = sbr.rel (0) target = $region17
    $region16: #{tpu_custom_call.1} parent=1 // pred_region
      _
    $region17: #{tpu_custom_call.1} parent=1 // pred_fallthru
      _
    // Predicated region
    $region18: #{tpu_custom_call.1} parent=1 // pred_check
      _
    $region19: #{tpu_custom_call.1} parent=1 // pred_check_branch
      %55 = sbr.rel (0) target = $region21
    $region20: #{tpu_custom_call.1} parent=1 // pred_region
      _
    $region21: #{tpu_custom_call.1} parent=1 // pred_fallthru
      _
    // Predicated region
    $region22: #{tpu_custom_call.1} parent=1 // pred_check
      _
    $region23: #{tpu_custom_call.1} parent=1 // pred_check_branch
      %57 = sbr.rel (0) target = $region25
    $region24: #{tpu_custom_call.1} parent=1 // pred_region
      %s59 = ssub.s32 1024, 1024
      %60 = vsyncadd [#allocation9], %s59
      %s61 = sshll.u32 [#allocation8], 4
      %s62 = int_to_ptr.vmem [resolvable:$true] %s61
      %67 = dma.hbm_to_vmem [thread:$0]  %s5, 1024, %s62, [#allocation9], 64, 64, 4
    $region25: #{tpu_custom_call.1} parent=1 // pred_fallthru
      _
    // Predicated region
    $region26: #{tpu_custom_call.1} parent=1 // pred_check
      _
    $region27: #{tpu_custom_call.1} parent=1 // pred_check_branch
      %69 = sbr.rel (0) target = $region29
    $region28: #{tpu_custom_call.1} parent=1 // pred_region
      _
    $region29: #{tpu_custom_call.1} parent=1 // pred_fallthru
      _
    // Predicated region
    $region30: #{tpu_custom_call.1} parent=1 // pred_check
      _
    $region31: #{tpu_custom_call.1} parent=1 // pred_check_branch
      %71 = sbr.rel (0) target = $region33
    $region32: #{tpu_custom_call.1} parent=1 // pred_region
      %72 = dma.done [#allocation3], 1024
    $region33: #{tpu_custom_call.1} parent=1 // pred_fallthru
      _
    // Predicated region
    $region34: #{tpu_custom_call.1} parent=1 // pred_check
      _
    $region35: #{tpu_custom_call.1} parent=1 // pred_check_branch
      %74 = sbr.rel (0) target = $region37
    $region36: #{tpu_custom_call.1} parent=1 // pred_region
      %75 = dma.done [#allocation6], 1024
    $region37: #{tpu_custom_call.1} parent=1 // pred_fallthru
      _
    // Predicated region
    $region38: #{tpu_custom_call.1} parent=1 // pred_check
      _
    $region39: #{tpu_custom_call.1} parent=1 // pred_check_branch
      %77 = sbr.rel (0) target = $region41
    $region40: #{tpu_custom_call.1} parent=1 // pred_region
      %78 = dma.done [#allocation6], 1024
    $region41: #{tpu_custom_call.1} parent=1 // pred_fallthru
      _
    // Predicated region
    $region42: #{tpu_custom_call.1} parent=1 // pred_check
      _
    $region43: #{tpu_custom_call.1} parent=1 // pred_check_branch
      %80 = sbr.rel (0) target = $region45
    $region44: #{tpu_custom_call.1} parent=1 // pred_region
      %81 = dma.done [#allocation9], 1024
    $region45: #{tpu_custom_call.1} parent=1 // pred_fallthru
      _
    %v83 = vld [vmem:[#allocation5] sm:$0xf]
    %v84 = vld [vmem:[#allocation5 + $0x4] sm:$0xf]
    %v85 = vld [vmem:[#allocation5 + $0x8] sm:$0xf]
    %v86 = vld [vmem:[#allocation5 + $0xc] sm:$0xf]
    %v87 = vld [vmem:[#allocation5 + $0x10] sm:$0xf]
    %v88 = vld [vmem:[#allocation5 + $0x14] sm:$0xf]
    %v89 = vld [vmem:[#allocation5 + $0x18] sm:$0xf]
    %v90 = vld [vmem:[#allocation5 + $0x1c] sm:$0xf]
    %v91 = vld [vmem:[#allocation5 + $0x20] sm:$0xf]
    %v92 = vld [vmem:[#allocation5 + $0x24] sm:$0xf]
    %v93 = vld [vmem:[#allocation5 + $0x28] sm:$0xf]
    %v94 = vld [vmem:[#allocation5 + $0x2c] sm:$0xf]
    %v95 = vld [vmem:[#allocation5 + $0x30] sm:$0xf]
    %v96 = vld [vmem:[#allocation5 + $0x34] sm:$0xf]
    %v97 = vld [vmem:[#allocation5 + $0x38] sm:$0xf]
    %v98 = vld [vmem:[#allocation5 + $0x3c] sm:$0xf]
    %v99 = vld [vmem:[#allocation7] sm:$0xf]
    %v100 = vld [vmem:[#allocation7 + $0x4] sm:$0xf]
    %v101 = vld [vmem:[#allocation7 + $0x8] sm:$0xf]
    %v102 = vld [vmem:[#allocation7 + $0xc] sm:$0xf]
    %v103 = vld [vmem:[#allocation7 + $0x10] sm:$0xf]
    %v104 = vld [vmem:[#allocation7 + $0x14] sm:$0xf]
    %v105 = vld [vmem:[#allocation7 + $0x18] sm:$0xf]
    %v106 = vld [vmem:[#allocation7 + $0x1c] sm:$0xf]
    %v107 = vld [vmem:[#allocation7 + $0x20] sm:$0xf]
    %v108 = vld [vmem:[#allocation7 + $0x24] sm:$0xf]
    %v109 = vld [vmem:[#allocation7 + $0x28] sm:$0xf]
    %v110 = vld [vmem:[#allocation7 + $0x2c] sm:$0xf]
    %v111 = vld [vmem:[#allocation7 + $0x30] sm:$0xf]
    %v112 = vld [vmem:[#allocation7 + $0x34] sm:$0xf]
    %v113 = vld [vmem:[#allocation7 + $0x38] sm:$0xf]
    %v114 = vld [vmem:[#allocation7 + $0x3c] sm:$0xf]
    %v131 = vunpack.c.l.b16 %v83
    %v132 = vunpack.c.l.b16 %v84
    %v133 = vunpack.c.l.b16 %v85
    %v134 = vunpack.c.l.b16 %v86
    %v135 = vunpack.c.l.b16 %v87
    %v136 = vunpack.c.l.b16 %v88
    %v137 = vunpack.c.l.b16 %v89
    %v138 = vunpack.c.l.b16 %v90
    %v139 = vunpack.c.l.b16 %v91
    %v140 = vunpack.c.l.b16 %v92
    %v141 = vunpack.c.l.b16 %v93
    %v142 = vunpack.c.l.b16 %v94
    %v143 = vunpack.c.l.b16 %v95
    %v144 = vunpack.c.l.b16 %v96
    %v145 = vunpack.c.l.b16 %v97
    %v146 = vunpack.c.l.b16 %v98
    %v147 = vpack.c.b16 %v132, %v131
    %v148 = vpack.c.b16 %v134, %v133
    %v149 = vpack.c.b16 %v136, %v135
    %v150 = vpack.c.b16 %v138, %v137
    %v151 = vpack.c.b16 %v140, %v139
    %v152 = vpack.c.b16 %v142, %v141
    %v153 = vpack.c.b16 %v144, %v143
    %v154 = vpack.c.b16 %v146, %v145
    %v179 = vunpack.c.l.b16 %v99
    %v180 = vunpack.c.l.b16 %v100
    %v181 = vunpack.c.l.b16 %v101
    %v182 = vunpack.c.l.b16 %v102
    %v183 = vunpack.c.l.b16 %v103
    %v184 = vunpack.c.l.b16 %v104
    %v185 = vunpack.c.l.b16 %v105
    %v186 = vunpack.c.l.b16 %v106
    %v187 = vunpack.c.l.b16 %v107
    %v188 = vunpack.c.l.b16 %v108
    %v189 = vunpack.c.l.b16 %v109
    %v190 = vunpack.c.l.b16 %v110
    %v191 = vunpack.c.l.b16 %v111
    %v192 = vunpack.c.l.b16 %v112
    %v193 = vunpack.c.l.b16 %v113
    %v194 = vunpack.c.l.b16 %v114
    %v195 = vpack.c.b16 %v180, %v179
    %v196 = vpack.c.b16 %v182, %v181
    %v197 = vpack.c.b16 %v184, %v183
    %v198 = vpack.c.b16 %v186, %v185
    %v199 = vpack.c.b16 %v188, %v187
    %v200 = vpack.c.b16 %v190, %v189
    %v201 = vpack.c.b16 %v192, %v191
    %v202 = vpack.c.b16 %v194, %v193
    %211 = vmatprep.subr.bf16.mxu0 0
    %212 = vmatpush1.bf16.msra.mxu0 %v195
    %213 = vmatprep.subr.bf16.mxu0 0
    %214 = vmatpush1.bf16.msra.mxu0 %v196
    %215 = vmatprep.subr.bf16.mxu0 0
    %216 = vmatpush1.bf16.msra.mxu0 %v197
    %217 = vmatprep.subr.bf16.mxu0 0
    %218 = vmatpush1.bf16.msra.mxu0 %v198
    %219 = vmatprep.subr.bf16.mxu0 0
    %220 = vmatpush1.bf16.msra.mxu0 %v199
    %221 = vmatprep.subr.bf16.mxu0 0
    %222 = vmatpush1.bf16.msra.mxu0 %v200
    %223 = vmatprep.subr.bf16.mxu0 0
    %224 = vmatpush1.bf16.msra.mxu0 %v201
    %225 = vmatprep.subr.bf16.mxu0 0
    %226 = vmatpush1.bf16.msra.mxu0 %v202
    %227 = vmatprep.subr.bf16.mxu0 0
    %228 = vmatpush1.bf16.msra.mxu0 0
    %229 = vmatprep.subr.bf16.mxu0 0
    %230 = vmatpush1.bf16.msra.mxu0 0
    %231 = vmatprep.subr.bf16.mxu0 0
    %232 = vmatpush1.bf16.msra.mxu0 0
    %233 = vmatprep.subr.bf16.mxu0 0
    %234 = vmatpush1.bf16.msra.mxu0 0
    %235 = vmatprep.subr.bf16.mxu0 0
    %236 = vmatpush1.bf16.msra.mxu0 0
    %237 = vmatprep.subr.bf16.mxu0 0
    %238 = vmatpush1.bf16.msra.mxu0 0
    %239 = vmatprep.subr.bf16.mxu0 0
    %240 = vmatpush1.bf16.msra.mxu0 0
    %241 = vmatprep.subr.bf16.mxu0 0
    %242 = vmatpush1.bf16.msra.mxu0 0
    %243 = vmatprep.mubr.bf16.mxu0 0
    %244 = vmatmul.mubr.bf16.gmra.mrb[0].mxu0 %v147
    %v245 = vpop.f32.mrb[0].mxu0
    %v246 = vadd.f32 0.0, %v245
    %v247 = vpop.f32.mrb[0].mxu0
    %v248 = vpop.f32.mrb[0].mxu0
    %v249 = vadd.f32 0.0, %v248
    %v250 = vpop.f32.mrb[0].mxu0
    %251 = vmatprep.mubr.bf16.mxu0 0
    %252 = vmatmul.mubr.bf16.gmra.mrb[0].mxu0 %v148
    %v253 = vpop.f32.mrb[0].mxu0
    %v254 = vadd.f32 0.0, %v253
    %v255 = vpop.f32.mrb[0].mxu0
    %v256 = vpop.f32.mrb[0].mxu0
    %v257 = vadd.f32 0.0, %v256
    %v258 = vpop.f32.mrb[0].mxu0
    %259 = vmatprep.mubr.bf16.mxu0 0
    %260 = vmatmul.mubr.bf16.gmra.mrb[0].mxu0 %v149
    %v261 = vpop.f32.mrb[0].mxu0
    %v262 = vadd.f32 0.0, %v261
    %v263 = vpop.f32.mrb[0].mxu0
    %v264 = vpop.f32.mrb[0].mxu0
    %v265 = vadd.f32 0.0, %v264
    %v266 = vpop.f32.mrb[0].mxu0
    %267 = vmatprep.mubr.bf16.mxu0 0
    %268 = vmatmul.mubr.bf16.gmra.mrb[0].mxu0 %v150
    %v269 = vpop.f32.mrb[0].mxu0
    %v270 = vadd.f32 0.0, %v269
    %v271 = vpop.f32.mrb[0].mxu0
    %v272 = vpop.f32.mrb[0].mxu0
    %v273 = vadd.f32 0.0, %v272
    %v274 = vpop.f32.mrb[0].mxu0
    %275 = vmatprep.mubr.bf16.mxu0 0
    %276 = vmatmul.mubr.bf16.gmra.mrb[0].mxu0 %v151
    %v277 = vpop.f32.mrb[0].mxu0
    %v278 = vadd.f32 0.0, %v277
    %v279 = vpop.f32.mrb[0].mxu0
    %v280 = vpop.f32.mrb[0].mxu0
    %v281 = vadd.f32 0.0, %v280
    %v282 = vpop.f32.mrb[0].mxu0
    %283 = vmatprep.mubr.bf16.mxu0 0
    %284 = vmatmul.mubr.bf16.gmra.mrb[0].mxu0 %v152
    %v285 = vpop.f32.mrb[0].mxu0
    %v286 = vadd.f32 0.0, %v285
    %v287 = vpop.f32.mrb[0].mxu0
    %v288 = vpop.f32.mrb[0].mxu0
    %v289 = vadd.f32 0.0, %v288
    %v290 = vpop.f32.mrb[0].mxu0
    %291 = vmatprep.mubr.bf16.mxu0 0
    %292 = vmatmul.mubr.bf16.gmra.mrb[0].mxu0 %v153
    %v293 = vpop.f32.mrb[0].mxu0
    %v294 = vadd.f32 0.0, %v293
    %v295 = vpop.f32.mrb[0].mxu0
    %v296 = vpop.f32.mrb[0].mxu0
    %v297 = vadd.f32 0.0, %v296
    %v298 = vpop.f32.mrb[0].mxu0
    %299 = vmatprep.mubr.bf16.mxu0 0
    %300 = vmatmul.mubr.bf16.gmra.mrb[0].mxu0 %v154
    %v301 = vpop.f32.mrb[0].mxu0
    %v302 = vadd.f32 0.0, %v301
    %v303 = vpop.f32.mrb[0].mxu0
    %v304 = vpop.f32.mrb[0].mxu0
    %v305 = vadd.f32 0.0, %v304
    %v306 = vpop.f32.mrb[0].mxu0
    %307 = vdwg.mxu0
    %v308 = vld [vmem:[#allocation2] sm:$0xf]
    %v309 = vld [vmem:[#allocation2 + $0x4] sm:$0xf]
    %v310 = vld [vmem:[#allocation2 + $0x8] sm:$0xf]
    %v311 = vld [vmem:[#allocation2 + $0xc] sm:$0xf]
    %v312 = vld [vmem:[#allocation2 + $0x10] sm:$0xf]
    %v313 = vld [vmem:[#allocation2 + $0x14] sm:$0xf]
    %v314 = vld [vmem:[#allocation2 + $0x18] sm:$0xf]
    %v315 = vld [vmem:[#allocation2 + $0x1c] sm:$0xf]
    %v316 = vld [vmem:[#allocation2 + $0x20] sm:$0xf]
    %v317 = vld [vmem:[#allocation2 + $0x24] sm:$0xf]
    %v318 = vld [vmem:[#allocation2 + $0x28] sm:$0xf]
    %v319 = vld [vmem:[#allocation2 + $0x2c] sm:$0xf]
    %v320 = vld [vmem:[#allocation2 + $0x30] sm:$0xf]
    %v321 = vld [vmem:[#allocation2 + $0x34] sm:$0xf]
    %v322 = vld [vmem:[#allocation2 + $0x38] sm:$0xf]
    %v323 = vld [vmem:[#allocation2 + $0x3c] sm:$0xf]
    %v324 = vpack.c.bf16 %v249, %v246
    %v325 = vpack.c.bf16 %v257, %v254
    %v326 = vpack.c.bf16 %v265, %v262
    %v327 = vpack.c.bf16 %v273, %v270
    %v328 = vpack.c.bf16 %v281, %v278
    %v329 = vpack.c.bf16 %v289, %v286
    %v330 = vpack.c.bf16 %v297, %v294
    %v331 = vpack.c.bf16 %v305, %v302
    %v348 = vunpack.c.l.b16 %v308
    %v349 = vunpack.c.l.b16 %v309
    %v350 = vunpack.c.l.b16 %v310
    %v351 = vunpack.c.l.b16 %v311
    %v352 = vunpack.c.l.b16 %v312
    %v353 = vunpack.c.l.b16 %v313
    %v354 = vunpack.c.l.b16 %v314
    %v355 = vunpack.c.l.b16 %v315
    %v356 = vunpack.c.l.b16 %v316
    %v357 = vunpack.c.l.b16 %v317
    %v358 = vunpack.c.l.b16 %v318
    %v359 = vunpack.c.l.b16 %v319
    %v360 = vunpack.c.l.b16 %v320
    %v361 = vunpack.c.l.b16 %v321
    %v362 = vunpack.c.l.b16 %v322
    %v363 = vunpack.c.l.b16 %v323
    %v364 = vpack.c.b16 %v349, %v348
    %v365 = vpack.c.b16 %v351, %v350
    %v366 = vpack.c.b16 %v353, %v352
    %v367 = vpack.c.b16 %v355, %v354
    %v368 = vpack.c.b16 %v357, %v356
    %v369 = vpack.c.b16 %v359, %v358
    %v370 = vpack.c.b16 %v361, %v360
    %v371 = vpack.c.b16 %v363, %v362
    %380 = vmatprep.subr.bf16.mxu0 0
    %381 = vmatpush1.bf16.msra.mxu0 %v324
    %382 = vmatprep.subr.bf16.mxu0 0
    %383 = vmatpush1.bf16.msra.mxu0 %v325
    %384 = vmatprep.subr.bf16.mxu0 0
    %385 = vmatpush1.bf16.msra.mxu0 %v326
    %386 = vmatprep.subr.bf16.mxu0 0
    %387 = vmatpush1.bf16.msra.mxu0 %v327
    %388 = vmatprep.subr.bf16.mxu0 0
    %389 = vmatpush1.bf16.msra.mxu0 %v328
    %390 = vmatprep.subr.bf16.mxu0 0
    %391 = vmatpush1.bf16.msra.mxu0 %v329
    %392 = vmatprep.subr.bf16.mxu0 0
    %393 = vmatpush1.bf16.msra.mxu0 %v330
    %394 = vmatprep.subr.bf16.mxu0 0
    %395 = vmatpush1.bf16.msra.mxu0 %v331
    %396 = vmatprep.subr.bf16.mxu0 0
    %397 = vmatpush1.bf16.msra.mxu0 0
    %398 = vmatprep.subr.bf16.mxu0 0
    %399 = vmatpush1.bf16.msra.mxu0 0
    %400 = vmatprep.subr.bf16.mxu0 0
    %401 = vmatpush1.bf16.msra.mxu0 0
    %402 = vmatprep.subr.bf16.mxu0 0
    %403 = vmatpush1.bf16.msra.mxu0 0
    %404 = vmatprep.subr.bf16.mxu0 0
    %405 = vmatpush1.bf16.msra.mxu0 0
    %406 = vmatprep.subr.bf16.mxu0 0
    %407 = vmatpush1.bf16.msra.mxu0 0
    %408 = vmatprep.subr.bf16.mxu0 0
    %409 = vmatpush1.bf16.msra.mxu0 0
    %410 = vmatprep.subr.bf16.mxu0 0
    %411 = vmatpush1.bf16.msra.mxu0 0
    %412 = vmatprep.mubr.bf16.mxu0 0
    %413 = vmatmul.mubr.bf16.gmra.mrb[0].mxu0 %v364
    %v414 = vpop.f32.mrb[0].mxu0
    %v415 = vadd.f32 0.0, %v414
    %v416 = vpop.f32.mrb[0].mxu0
    %v417 = vpop.f32.mrb[0].mxu0
    %v418 = vadd.f32 0.0, %v417
    %v419 = vpop.f32.mrb[0].mxu0
    %420 = vmatprep.mubr.bf16.mxu0 0
    %421 = vmatmul.mubr.bf16.gmra.mrb[0].mxu0 %v365
    %v422 = vpop.f32.mrb[0].mxu0
    %v423 = vadd.f32 0.0, %v422
    %v424 = vpop.f32.mrb[0].mxu0
    %v425 = vpop.f32.mrb[0].mxu0
    %v426 = vadd.f32 0.0, %v425
    %v427 = vpop.f32.mrb[0].mxu0
    %428 = vmatprep.mubr.bf16.mxu0 0
    %429 = vmatmul.mubr.bf16.gmra.mrb[0].mxu0 %v366
    %v430 = vpop.f32.mrb[0].mxu0
    %v431 = vadd.f32 0.0, %v430
    %v432 = vpop.f32.mrb[0].mxu0
    %v433 = vpop.f32.mrb[0].mxu0
    %v434 = vadd.f32 0.0, %v433
    %v435 = vpop.f32.mrb[0].mxu0
    %436 = vmatprep.mubr.bf16.mxu0 0
    %437 = vmatmul.mubr.bf16.gmra.mrb[0].mxu0 %v367
    %v438 = vpop.f32.mrb[0].mxu0
    %v439 = vadd.f32 0.0, %v438
    %v440 = vpop.f32.mrb[0].mxu0
    %v441 = vpop.f32.mrb[0].mxu0
    %v442 = vadd.f32 0.0, %v441
    %v443 = vpop.f32.mrb[0].mxu0
    %444 = vmatprep.mubr.bf16.mxu0 0
    %445 = vmatmul.mubr.bf16.gmra.mrb[0].mxu0 %v368
    %v446 = vpop.f32.mrb[0].mxu0
    %v447 = vadd.f32 0.0, %v446
    %v448 = vpop.f32.mrb[0].mxu0
    %v449 = vpop.f32.mrb[0].mxu0
    %v450 = vadd.f32 0.0, %v449
    %v451 = vpop.f32.mrb[0].mxu0
    %452 = vmatprep.mubr.bf16.mxu0 0
    %453 = vmatmul.mubr.bf16.gmra.mrb[0].mxu0 %v369
    %v454 = vpop.f32.mrb[0].mxu0
    %v455 = vadd.f32 0.0, %v454
    %v456 = vpop.f32.mrb[0].mxu0
    %v457 = vpop.f32.mrb[0].mxu0
    %v458 = vadd.f32 0.0, %v457
    %v459 = vpop.f32.mrb[0].mxu0
    %460 = vmatprep.mubr.bf16.mxu0 0
    %461 = vmatmul.mubr.bf16.gmra.mrb[0].mxu0 %v370
    %v462 = vpop.f32.mrb[0].mxu0
    %v463 = vadd.f32 0.0, %v462
    %v464 = vpop.f32.mrb[0].mxu0
    %v465 = vpop.f32.mrb[0].mxu0
    %v466 = vadd.f32 0.0, %v465
    %v467 = vpop.f32.mrb[0].mxu0
    %468 = vmatprep.mubr.bf16.mxu0 0
    %469 = vmatmul.mubr.bf16.gmra.mrb[0].mxu0 %v371
    %v470 = vpop.f32.mrb[0].mxu0
    %v471 = vadd.f32 0.0, %v470
    %v472 = vpop.f32.mrb[0].mxu0
    %v473 = vpop.f32.mrb[0].mxu0
    %v474 = vadd.f32 0.0, %v473
    %v475 = vpop.f32.mrb[0].mxu0
    %476 = vdwg.mxu0
    %v477 = vpack.c.bf16 %v418, %v415
    %v478 = vpack.c.bf16 %v426, %v423
    %v479 = vpack.c.bf16 %v434, %v431
    %v480 = vpack.c.bf16 %v442, %v439
    %v481 = vpack.c.bf16 %v450, %v447
    %v482 = vpack.c.bf16 %v458, %v455
    %v483 = vpack.c.bf16 %v466, %v463
    %v484 = vpack.c.bf16 %v474, %v471
    %485 = vmatprep.subr.bf16.mxu0 0
    %486 = vmatpush1.bf16.msra.mxu0 %v477
    %487 = vmatprep.subr.bf16.mxu0 0
    %488 = vmatpush1.bf16.msra.mxu0 %v478
    %489 = vmatprep.subr.bf16.mxu0 0
    %490 = vmatpush1.bf16.msra.mxu0 %v479
    %491 = vmatprep.subr.bf16.mxu0 0
    %492 = vmatpush1.bf16.msra.mxu0 %v480
    %493 = vmatprep.subr.bf16.mxu0 0
    %494 = vmatpush1.bf16.msra.mxu0 %v481
    %495 = vmatprep.subr.bf16.mxu0 0
    %496 = vmatpush1.bf16.msra.mxu0 %v482
    %497 = vmatprep.subr.bf16.mxu0 0
    %498 = vmatpush1.bf16.msra.mxu0 %v483
    %499 = vmatprep.subr.bf16.mxu0 0
    %500 = vmatpush1.bf16.msra.mxu0 %v484
    %501 = vmatprep.subr.bf16.mxu0 0
    %502 = vmatpush1.bf16.msra.mxu0 0
    %503 = vmatprep.subr.bf16.mxu0 0
    %504 = vmatpush1.bf16.msra.mxu0 0
    %505 = vmatprep.subr.bf16.mxu0 0
    %506 = vmatpush1.bf16.msra.mxu0 0
    %507 = vmatprep.subr.bf16.mxu0 0
    %508 = vmatpush1.bf16.msra.mxu0 0
    %509 = vmatprep.subr.bf16.mxu0 0
    %510 = vmatpush1.bf16.msra.mxu0 0
    %511 = vmatprep.subr.bf16.mxu0 0
    %512 = vmatpush1.bf16.msra.mxu0 0
    %513 = vmatprep.subr.bf16.mxu0 0
    %514 = vmatpush1.bf16.msra.mxu0 0
    %515 = vmatprep.subr.bf16.mxu0 0
    %516 = vmatpush1.bf16.msra.mxu0 0
    %517 = vmatprep.mubr.bf16.mxu0 0
    %518 = vmatmul.mubr.bf16.gmra.mrb[0].mxu0 %v364
    %v519 = vpop.f32.mrb[0].mxu0
    %v520 = vadd.f32 0.0, %v519
    %v521 = vpop.f32.mrb[0].mxu0
    %v522 = vpop.f32.mrb[0].mxu0
    %v523 = vadd.f32 0.0, %v522
    %v524 = vpop.f32.mrb[0].mxu0
    %525 = vmatprep.mubr.bf16.mxu0 0
    %526 = vmatmul.mubr.bf16.gmra.mrb[0].mxu0 %v365
    %v527 = vpop.f32.mrb[0].mxu0
    %v528 = vadd.f32 0.0, %v527
    %v529 = vpop.f32.mrb[0].mxu0
    %v530 = vpop.f32.mrb[0].mxu0
    %v531 = vadd.f32 0.0, %v530
    %v532 = vpop.f32.mrb[0].mxu0
    %533 = vmatprep.mubr.bf16.mxu0 0
    %534 = vmatmul.mubr.bf16.gmra.mrb[0].mxu0 %v366
    %v535 = vpop.f32.mrb[0].mxu0
    %v536 = vadd.f32 0.0, %v535
    %v537 = vpop.f32.mrb[0].mxu0
    %v538 = vpop.f32.mrb[0].mxu0
    %v539 = vadd.f32 0.0, %v538
    %v540 = vpop.f32.mrb[0].mxu0
    %541 = vmatprep.mubr.bf16.mxu0 0
    %542 = vmatmul.mubr.bf16.gmra.mrb[0].mxu0 %v367
    %v543 = vpop.f32.mrb[0].mxu0
    %v544 = vadd.f32 0.0, %v543
    %v545 = vpop.f32.mrb[0].mxu0
    %v546 = vpop.f32.mrb[0].mxu0
    %v547 = vadd.f32 0.0, %v546
    %v548 = vpop.f32.mrb[0].mxu0
    %549 = vmatprep.mubr.bf16.mxu0 0
    %550 = vmatmul.mubr.bf16.gmra.mrb[0].mxu0 %v368
    %v551 = vpop.f32.mrb[0].mxu0
    %v552 = vadd.f32 0.0, %v551
    %v553 = vpop.f32.mrb[0].mxu0
    %v554 = vpop.f32.mrb[0].mxu0
    %v555 = vadd.f32 0.0, %v554
    %v556 = vpop.f32.mrb[0].mxu0
    %557 = vmatprep.mubr.bf16.mxu0 0
    %558 = vmatmul.mubr.bf16.gmra.mrb[0].mxu0 %v369
    %v559 = vpop.f32.mrb[0].mxu0
    %v560 = vadd.f32 0.0, %v559
    %v561 = vpop.f32.mrb[0].mxu0
    %v562 = vpop.f32.mrb[0].mxu0
    %v563 = vadd.f32 0.0, %v562
    %v564 = vpop.f32.mrb[0].mxu0
    %565 = vmatprep.mubr.bf16.mxu0 0
    %566 = vmatmul.mubr.bf16.gmra.mrb[0].mxu0 %v370
    %v567 = vpop.f32.mrb[0].mxu0
    %v568 = vadd.f32 0.0, %v567
    %v569 = vpop.f32.mrb[0].mxu0
    %v570 = vpop.f32.mrb[0].mxu0
    %v571 = vadd.f32 0.0, %v570
    %v572 = vpop.f32.mrb[0].mxu0
    %573 = vmatprep.mubr.bf16.mxu0 0
    %574 = vmatmul.mubr.bf16.gmra.mrb[0].mxu0 %v371
    %v575 = vpop.f32.mrb[0].mxu0
    %v576 = vadd.f32 0.0, %v575
    %v577 = vpop.f32.mrb[0].mxu0
    %v578 = vpop.f32.mrb[0].mxu0
    %v579 = vadd.f32 0.0, %v578
    %v580 = vpop.f32.mrb[0].mxu0
    %581 = vdwg.mxu0
    %v582 = vpack.c.bf16 %v523, %v520
    %v583 = vpack.c.bf16 %v531, %v528
    %v584 = vpack.c.bf16 %v539, %v536
    %v585 = vpack.c.bf16 %v547, %v544
    %v586 = vpack.c.bf16 %v555, %v552
    %v587 = vpack.c.bf16 %v563, %v560
    %v588 = vpack.c.bf16 %v571, %v568
    %v589 = vpack.c.bf16 %v579, %v576
    %v590 = vld [vmem:[%s3] sm:$0x1]
    %v592 = vlaneseq
    %v593 = vshrl.u32 %v592, 7
    %v594 = vsub.s32 0, %v593
    %v595 = vrot.slane %v590, %v594
    %597 = vmatprep.subr.bf16.mxu0 0
    %598 = vmatpush1.bf16.msra.mxu0 %v582
    %599 = vmatprep.subr.bf16.mxu0 0
    %600 = vmatpush1.bf16.msra.mxu0 %v583
    %601 = vmatprep.subr.bf16.mxu0 0
    %602 = vmatpush1.bf16.msra.mxu0 %v584
    %603 = vmatprep.subr.bf16.mxu0 0
    %604 = vmatpush1.bf16.msra.mxu0 %v585
    %605 = vmatprep.subr.bf16.mxu0 0
    %606 = vmatpush1.bf16.msra.mxu0 %v586
    %607 = vmatprep.subr.bf16.mxu0 0
    %608 = vmatpush1.bf16.msra.mxu0 %v587
    %609 = vmatprep.subr.bf16.mxu0 0
    %610 = vmatpush1.bf16.msra.mxu0 %v588
    %611 = vmatprep.subr.bf16.mxu0 0
    %612 = vmatpush1.bf16.msra.mxu0 %v589
    %613 = vmatprep.subr.bf16.mxu0 0
    %614 = vmatpush1.bf16.msra.mxu0 0
    %615 = vmatprep.subr.bf16.mxu0 0
    %616 = vmatpush1.bf16.msra.mxu0 0
    %617 = vmatprep.subr.bf16.mxu0 0
    %618 = vmatpush1.bf16.msra.mxu0 0
    %619 = vmatprep.subr.bf16.mxu0 0
    %620 = vmatpush1.bf16.msra.mxu0 0
    %621 = vmatprep.subr.bf16.mxu0 0
    %622 = vmatpush1.bf16.msra.mxu0 0
    %623 = vmatprep.subr.bf16.mxu0 0
    %624 = vmatpush1.bf16.msra.mxu0 0
    %625 = vmatprep.subr.bf16.mxu0 0
    %626 = vmatpush1.bf16.msra.mxu0 0
    %627 = vmatprep.subr.bf16.mxu0 0
    %628 = vmatpush1.bf16.msra.mxu0 0
    %629 = vmatprep.mubr.bf16.mxu0 0
    %630 = vmatmul.mubr.bf16.gmra.mrb[0].mxu0 %v364
    %v631 = vpop.f32.mrb[0].mxu0
    %v632 = vadd.f32 %v595, %v631
    %v633 = vpop.f32.mrb[0].mxu0
    %v634 = vpop.f32.mrb[0].mxu0
    %v635 = vadd.f32 %v595, %v634
    %v636 = vpop.f32.mrb[0].mxu0
    %637 = vmatprep.mubr.bf16.mxu0 0
    %638 = vmatmul.mubr.bf16.gmra.mrb[0].mxu0 %v365
    %v639 = vpop.f32.mrb[0].mxu0
    %v640 = vadd.f32 %v595, %v639
    %v641 = vpop.f32.mrb[0].mxu0
    %v642 = vpop.f32.mrb[0].mxu0
    %v643 = vadd.f32 %v595, %v642
    %v644 = vpop.f32.mrb[0].mxu0
    %645 = vmatprep.mubr.bf16.mxu0 0
    %646 = vmatmul.mubr.bf16.gmra.mrb[0].mxu0 %v366
    %v647 = vpop.f32.mrb[0].mxu0
    %v648 = vadd.f32 %v595, %v647
    %v649 = vpop.f32.mrb[0].mxu0
    %v650 = vpop.f32.mrb[0].mxu0
    %v651 = vadd.f32 %v595, %v650
    %v652 = vpop.f32.mrb[0].mxu0
    %653 = vmatprep.mubr.bf16.mxu0 0
    %654 = vmatmul.mubr.bf16.gmra.mrb[0].mxu0 %v367
    %v655 = vpop.f32.mrb[0].mxu0
    %v656 = vadd.f32 %v595, %v655
    %v657 = vpop.f32.mrb[0].mxu0
    %v658 = vpop.f32.mrb[0].mxu0
    %v659 = vadd.f32 %v595, %v658
    %v660 = vpop.f32.mrb[0].mxu0
    %661 = vmatprep.mubr.bf16.mxu0 0
    %662 = vmatmul.mubr.bf16.gmra.mrb[0].mxu0 %v368
    %v663 = vpop.f32.mrb[0].mxu0
    %v664 = vadd.f32 %v595, %v663
    %v665 = vpop.f32.mrb[0].mxu0
    %v666 = vpop.f32.mrb[0].mxu0
    %v667 = vadd.f32 %v595, %v666
    %v668 = vpop.f32.mrb[0].mxu0
    %669 = vmatprep.mubr.bf16.mxu0 0
    %670 = vmatmul.mubr.bf16.gmra.mrb[0].mxu0 %v369
    %v671 = vpop.f32.mrb[0].mxu0
    %v672 = vadd.f32 %v595, %v671
    %v673 = vpop.f32.mrb[0].mxu0
    %v674 = vpop.f32.mrb[0].mxu0
    %v675 = vadd.f32 %v595, %v674
    %v676 = vpop.f32.mrb[0].mxu0
    %677 = vmatprep.mubr.bf16.mxu0 0
    %678 = vmatmul.mubr.bf16.gmra.mrb[0].mxu0 %v370
    %v679 = vpop.f32.mrb[0].mxu0
    %v680 = vadd.f32 %v595, %v679
    %v681 = vpop.f32.mrb[0].mxu0
    %v682 = vpop.f32.mrb[0].mxu0
    %v683 = vadd.f32 %v595, %v682
    %v684 = vpop.f32.mrb[0].mxu0
    %685 = vmatprep.mubr.bf16.mxu0 0
    %686 = vmatmul.mubr.bf16.gmra.mrb[0].mxu0 %v371
    %v687 = vpop.f32.mrb[0].mxu0
    %v688 = vadd.f32 %v595, %v687
    %v689 = vpop.f32.mrb[0].mxu0
    %v690 = vpop.f32.mrb[0].mxu0
    %v691 = vadd.f32 %v595, %v690
    %v692 = vpop.f32.mrb[0].mxu0
    %693 = vdwg.mxu0
    %v694 = vmax.f32 %v632, 0.0
    %v695 = vmax.f32 %v635, 0.0
    %v696 = vmax.f32 %v640, 0.0
    %v697 = vmax.f32 %v643, 0.0
    %v698 = vmax.f32 %v648, 0.0
    %v699 = vmax.f32 %v651, 0.0
    %v700 = vmax.f32 %v656, 0.0
    %v701 = vmax.f32 %v659, 0.0
    %v702 = vmax.f32 %v664, 0.0
    %v703 = vmax.f32 %v667, 0.0
    %v704 = vmax.f32 %v672, 0.0
    %v705 = vmax.f32 %v675, 0.0
    %v706 = vmax.f32 %v680, 0.0
    %v707 = vmax.f32 %v683, 0.0
    %v708 = vmax.f32 %v688, 0.0
    %v709 = vmax.f32 %v691, 0.0
    %v710 = vld [vmem:[%s4] sm:$0xf]
    %v711 = vld [vmem:[%s4 + $0x4] sm:$0xf]
    %v712 = vpack.c.bf16 %v695, %v694
    %v713 = vpack.c.bf16 %v697, %v696
    %v714 = vpack.c.bf16 %v699, %v698
    %v715 = vpack.c.bf16 %v701, %v700
    %v716 = vpack.c.bf16 %v703, %v702
    %v717 = vpack.c.bf16 %v705, %v704
    %v718 = vpack.c.bf16 %v707, %v706
    %v719 = vpack.c.bf16 %v709, %v708
    %v722 = vunpack.c.l.b16 %v710
    %v723 = vunpack.c.l.b16 %v711
    %v724 = vpack.c.b16 %v723, %v722
    %726 = vmatprep.subr.bf16.mxu0 0
    %727 = vmatpush1.bf16.msra.mxu0 %v712
    %728 = vmatprep.subr.bf16.mxu0 0
    %729 = vmatpush1.bf16.msra.mxu0 %v713
    %730 = vmatprep.subr.bf16.mxu0 0
    %731 = vmatpush1.bf16.msra.mxu0 %v714
    %732 = vmatprep.subr.bf16.mxu0 0
    %733 = vmatpush1.bf16.msra.mxu0 %v715
    %734 = vmatprep.subr.bf16.mxu0 0
    %735 = vmatpush1.bf16.msra.mxu0 %v716
    %736 = vmatprep.subr.bf16.mxu0 0
    %737 = vmatpush1.bf16.msra.mxu0 %v717
    %738 = vmatprep.subr.bf16.mxu0 0
    %739 = vmatpush1.bf16.msra.mxu0 %v718
    %740 = vmatprep.subr.bf16.mxu0 0
    %741 = vmatpush1.bf16.msra.mxu0 %v719
    %742 = vmatprep.subr.bf16.mxu0 0
    %743 = vmatpush1.bf16.msra.mxu0 0
    %744 = vmatprep.subr.bf16.mxu0 0
    %745 = vmatpush1.bf16.msra.mxu0 0
    %746 = vmatprep.subr.bf16.mxu0 0
    %747 = vmatpush1.bf16.msra.mxu0 0
    %748 = vmatprep.subr.bf16.mxu0 0
    %749 = vmatpush1.bf16.msra.mxu0 0
    %750 = vmatprep.subr.bf16.mxu0 0
    %751 = vmatpush1.bf16.msra.mxu0 0
    %752 = vmatprep.subr.bf16.mxu0 0
    %753 = vmatpush1.bf16.msra.mxu0 0
    %754 = vmatprep.subr.bf16.mxu0 0
    %755 = vmatpush1.bf16.msra.mxu0 0
    %756 = vmatprep.subr.bf16.mxu0 0
    %757 = vmatpush1.bf16.msra.mxu0 0
    %758 = vmatprep.mubr.bf16.mxu0 0
    %759 = vmatmul.mubr.bf16.gmra.mrb[0].mxu0 %v724
    %v760 = vpop.f32.mrb[0].mxu0
    %v761 = vadd.f32 0.0, %v760
    %v762 = vpop.f32.mrb[0].mxu0
    %v763 = vpop.f32.mrb[0].mxu0
    %v764 = vadd.f32 0.0, %v763
    %v765 = vpop.f32.mrb[0].mxu0
    %766 = vdwg.mxu0
    %v767 = vpack.c.bf16 %v764, %v761
    %v768 = vld [vmem:[#allocation8] sm:$0xf]
    %v769 = vld [vmem:[#allocation8 + $0x4] sm:$0xf]
    %v770 = vld [vmem:[#allocation8 + $0x8] sm:$0xf]
    %v771 = vld [vmem:[#allocation8 + $0xc] sm:$0xf]
    %v772 = vld [vmem:[#allocation8 + $0x10] sm:$0xf]
    %v773 = vld [vmem:[#allocation8 + $0x14] sm:$0xf]
    %v774 = vld [vmem:[#allocation8 + $0x18] sm:$0xf]
    %v775 = vld [vmem:[#allocation8 + $0x1c] sm:$0xf]
    %v776 = vld [vmem:[#allocation8 + $0x20] sm:$0xf]
    %v777 = vld [vmem:[#allocation8 + $0x24] sm:$0xf]
    %v778 = vld [vmem:[#allocation8 + $0x28] sm:$0xf]
    %v779 = vld [vmem:[#allocation8 + $0x2c] sm:$0xf]
    %v780 = vld [vmem:[#allocation8 + $0x30] sm:$0xf]
    %v781 = vld [vmem:[#allocation8 + $0x34] sm:$0xf]
    %v782 = vld [vmem:[#allocation8 + $0x38] sm:$0xf]
    %v783 = vld [vmem:[#allocation8 + $0x3c] sm:$0xf]
    %v784 = vld [vmem:[%s6] sm:$0x1]
    %v786 = vlaneseq
    %v787 = vshrl.u32 %v786, 7
    %v788 = vsub.s32 0, %v787
    %v789 = vrot.slane %v784, %v788
    %v807 = vunpack.c.l.b16 %v768
    %v808 = vunpack.c.l.b16 %v769
    %v809 = vunpack.c.l.b16 %v770
    %v810 = vunpack.c.l.b16 %v771
    %v811 = vunpack.c.l.b16 %v772
    %v812 = vunpack.c.l.b16 %v773
    %v813 = vunpack.c.l.b16 %v774
    %v814 = vunpack.c.l.b16 %v775
    %v815 = vunpack.c.l.b16 %v776
    %v816 = vunpack.c.l.b16 %v777
    %v817 = vunpack.c.l.b16 %v778
    %v818 = vunpack.c.l.b16 %v779
    %v819 = vunpack.c.l.b16 %v780
    %v820 = vunpack.c.l.b16 %v781
    %v821 = vunpack.c.l.b16 %v782
    %v822 = vunpack.c.l.b16 %v783
    %v823 = vpack.c.b16 %v808, %v807
    %v824 = vpack.c.b16 %v810, %v809
    %v825 = vpack.c.b16 %v812, %v811
    %v826 = vpack.c.b16 %v814, %v813
    %v827 = vpack.c.b16 %v816, %v815
    %v828 = vpack.c.b16 %v818, %v817
    %v829 = vpack.c.b16 %v820, %v819
    %v830 = vpack.c.b16 %v822, %v821
    %839 = vmatprep.subr.bf16.mxu0 0
    %840 = vmatpush1.bf16.msra.mxu0 %v823
    %841 = vmatprep.subr.bf16.mxu0 0
    %842 = vmatpush1.bf16.msra.mxu0 %v824
    %843 = vmatprep.subr.bf16.mxu0 0
    %844 = vmatpush1.bf16.msra.mxu0 %v825
    %845 = vmatprep.subr.bf16.mxu0 0
    %846 = vmatpush1.bf16.msra.mxu0 %v826
    %847 = vmatprep.subr.bf16.mxu0 0
    %848 = vmatpush1.bf16.msra.mxu0 %v827
    %849 = vmatprep.subr.bf16.mxu0 0
    %850 = vmatpush1.bf16.msra.mxu0 %v828
    %851 = vmatprep.subr.bf16.mxu0 0
    %852 = vmatpush1.bf16.msra.mxu0 %v829
    %853 = vmatprep.subr.bf16.mxu0 0
    %854 = vmatpush1.bf16.msra.mxu0 %v830
    %855 = vmatprep.subr.bf16.mxu0 0
    %856 = vmatpush1.bf16.msra.mxu0 0
    %857 = vmatprep.subr.bf16.mxu0 0
    %858 = vmatpush1.bf16.msra.mxu0 0
    %859 = vmatprep.subr.bf16.mxu0 0
    %860 = vmatpush1.bf16.msra.mxu0 0
    %861 = vmatprep.subr.bf16.mxu0 0
    %862 = vmatpush1.bf16.msra.mxu0 0
    %863 = vmatprep.subr.bf16.mxu0 0
    %864 = vmatpush1.bf16.msra.mxu0 0
    %865 = vmatprep.subr.bf16.mxu0 0
    %866 = vmatpush1.bf16.msra.mxu0 0
    %867 = vmatprep.subr.bf16.mxu0 0
    %868 = vmatpush1.bf16.msra.mxu0 0
    %869 = vmatprep.subr.bf16.mxu0 0
    %870 = vmatpush1.bf16.msra.mxu0 0
    %871 = vmatprep.mubr.bf16.mxu0 0
    %872 = vmatmul.mubr.bf16.gmra.mrb[0].mxu0 %v767
    %v873 = vpop.f32.mrb[0].mxu0
    %v874 = vadd.f32 %v789, %v873
    %v875 = vpop.f32.mrb[0].mxu0
    %v876 = vpop.f32.mrb[0].mxu0
    %v877 = vadd.f32 %v789, %v876
    %v878 = vpop.f32.mrb[0].mxu0
    %879 = vdwg.mxu0
    %v880 = vsub.f32 0.0, %v874
    %v881 = vsub.f32 0.0, %v877
    %v882 = vmul.f32 %v880, 1.442695
    %v883 = vpow.pop %v882
    %v884 = vmul.f32 %v881, 1.442695
    %v885 = vpow.pop %v884
    %v886 = vadd.f32 %v883, 1.0
    %v887 = vadd.f32 %v885, 1.0
    %v888 = vrcp.pop %v886
    %v889 = vmul.f32 1.0, %v888
    %v890 = vrcp.pop %v887
    %v891 = vmul.f32 1.0, %v890
    %892 = vst [vmem:[#allocation10] sm:$0xff] %v889
    %893 = vst [vmem:[#allocation10 + $0x8] sm:$0xff] %v891
    // Predicated region
    $region46: #{tpu_custom_call.1} parent=1 // pred_check
      _
    $region47: #{tpu_custom_call.1} parent=1 // pred_check_branch
      %895 = sbr.rel (0) target = $region49
    $region48: #{tpu_custom_call.1} parent=1 // pred_region
      %s897 = ssub.s32 256, 256
      %898 = vsyncadd [#allocation4], %s897
      %s899 = sshll.u32 [#allocation10], 4
      %s900 = int_to_ptr.vmem [resolvable:$true] %s899
      %905 = dma.vmem_to_hbm [thread:$0]  %s900, 256, %s7, [#allocation4], 128, 128, 8
    $region49: #{tpu_custom_call.1} parent=1 // pred_fallthru
      _
    // Predicated region
    $region50: #{tpu_custom_call.1} parent=1 // pred_check
      _
    $region51: #{tpu_custom_call.1} parent=1 // pred_check_branch
      %907 = sbr.rel (0) target = $region53
    $region52: #{tpu_custom_call.1} parent=1 // pred_region
      %908 = dma.done [#allocation4], 256
    $region53: #{tpu_custom_call.1} parent=1 // pred_fallthru
      _
    %909 = vsyncpa [#allocation3], 1
    %910 = vsyncpa [#allocation6], 1
    %911 = vsyncpa [#allocation9], 1
    %912 = vsyncpa [#allocation4], 1

</llo_original>
